<compile_context>
chip_gen: v5e
topology: v5e:2x2
jax: 0.10.0
libtpu: 0.0.40
codegen_flags: <defaults>
</compile_context>

<pallas_src>
import functools
import re

import jax
import jax.numpy as jnp
from jax.experimental import pallas as pl
from jax.experimental.pallas import tpu as pltpu


# ----------------------------------------------------------------------------
# Generation-aware configuration (single-TC v5e/v6e vs dual-TC v7x/v4).
# ----------------------------------------------------------------------------
def _tpu_config():
    ver = 6
    try:
        kind = jax.devices()[0].device_kind.lower()
        m = re.search(r"(\d+)", kind)
        if m:
            ver = int(m.group(1))
    except Exception:  # non-TPU / exotic backend: conservative defaults
        pass
    two_tc = (ver >= 7) or (ver == 4)  # chips with 2 TensorCores per chip
    # v7x: 64 MiB physical VMEM -> cap scoped limit at 48 MiB.
    # v5e/v6e: 128 MiB physical -> 64 MiB gives headroom for full-dim blocks
    # (and avoids v5e's 16 MiB scoped default).
    vmem_limit = (48 if ver >= 7 else 64) * 1024 * 1024
    return ver, two_tc, vmem_limit


_TPU_VER, _TWO_TC, _VMEM_LIMIT = _tpu_config()


# ----------------------------------------------------------------------------
# Fused Pallas kernels: out = act(A @ B + bias), bias/scale per output column.
# A:[M,K] bf16.  B:[K,N] bf16 (BN scale pre-folded) OR int8 with per-column
# dequant scale.  K is never tiled (full-K blocks), so no accumulator carry.
# ----------------------------------------------------------------------------
def _fused_matmul_kernel(a_ref, b_ref, bias_ref, o_ref, *, relu):
    acc = jnp.dot(a_ref[...], b_ref[...], preferred_element_type=jnp.float32)
    y = acc + bias_ref[...]            # f32 epilogue on every TPU generation
    if relu:
        y = jnp.maximum(y, 0.0)
    o_ref[...] = y.astype(o_ref.dtype)


def _fused_matmul_q_kernel(a_ref, b_ref, scale_ref, bias_ref, o_ref, *, relu):
    # int8 weight streaming: upconvert on the VPU, MXU still runs bf16 x bf16.
    w = b_ref[...].astype(jnp.bfloat16)
    acc = jnp.dot(a_ref[...], w, preferred_element_type=jnp.float32)
    y = acc * scale_ref[...] + bias_ref[...]
    if relu:
        y = jnp.maximum(y, 0.0)
    o_ref[...] = y.astype(o_ref.dtype)


def fused_matmul(a, b, bias, *, relu, out_dtype=jnp.float32, tm=None, tn=None,
                 w_scale=None):
    """act(a @ dequant(b) + bias); a:[M,K], b:[K,N], bias:[N]. No HBM padding."""
    M, K = a.shape
    K2, N = b.shape
    assert K == K2
    a = a.astype(jnp.bfloat16)
    bias2d = bias.astype(jnp.float32).reshape(1, N)

    if tm is None or tm >= M:
        tm, gi = M, 1                       # full-dim M block (exempt from /8 rule)
    else:
        assert tm % 8 == 0
        gi = pl.cdiv(M, tm)                 # ragged last tile: OOB writes are masked
    if tn is None or tn >= N:
        tn, gj = N, 1                       # full-dim N block (exempt from /128 rule)
    else:
        assert tn % 128 == 0 and N % tn == 0
        gj = N // tn

    a_spec = pl.BlockSpec((tm, K), lambda i, j: (i, 0))
    b_spec = pl.BlockSpec((K, tn), lambda i, j: (0, j))
    vec_spec = pl.BlockSpec((1, tn), lambda i, j: (0, j))
    out_spec = pl.BlockSpec((tm, tn), lambda i, j: (i, j))
    cparams = pltpu.CompilerParams(
        dimension_semantics=("parallel", "parallel"),
        vmem_limit_bytes=_VMEM_LIMIT)

    if w_scale is None:
        b = b.astype(jnp.bfloat16)
        return pl.pallas_call(
            functools.partial(_fused_matmul_kernel, relu=relu),
            out_shape=jax.ShapeDtypeStruct((M, N), out_dtype),
            grid=(gi, gj),
            in_specs=[a_spec, b_spec, vec_spec],
            out_specs=out_spec,
            compiler_params=cparams,
        )(a, b, bias2d)

    assert b.dtype == jnp.int8
    scale2d = w_scale.astype(jnp.float32).reshape(1, N)
    return pl.pallas_call(
        functools.partial(_fused_matmul_q_kernel, relu=relu),
        out_shape=jax.ShapeDtypeStruct((M, N), out_dtype),
        grid=(gi, gj),
        in_specs=[a_spec, b_spec, vec_spec, vec_spec],
        out_specs=out_spec,
        compiler_params=cparams,
    )(a, b, scale2d, bias2d)


# ----------------------------------------------------------------------------
# Plain-JAX glue: im2col patch extraction, max-pool, parameters.
# ----------------------------------------------------------------------------
def _im2col(x, kh, kw, stride, padding):
    """x: [N,H,W,C] -> ([N*OH*OW, kh*kw*C], OH, OW); feature order (kh, kw, C)."""
    n, h, w, c = x.shape
    if padding:
        x = jnp.pad(x, ((0, 0), (padding, padding), (padding, padding), (0, 0)))
        h += 2 * padding
        w += 2 * padding
    oh = (h - kh) // stride + 1
    ow = (w - kw) // stride + 1
    cols = []
    for i in range(kh):
        for j in range(kw):
            cols.append(x[:, i:i + stride * (oh - 1) + 1:stride,
                          j:j + stride * (ow - 1) + 1:stride, :])
    p = jnp.stack(cols, axis=3)             # [N, OH, OW, kh*kw, C]
    return p.reshape(n * oh * ow, kh * kw * c), oh, ow


def conv_layer(x, wm, bias, *, kh, kw, stride, padding, tm=None, tn=None):
    """x NHWC bf16; wm:[kh*kw*Cin, Cout] bf16 (BN pre-folded); bias:[Cout] f32."""
    n = x.shape[0]
    cout = wm.shape[1]
    patches, oh, ow = _im2col(x, kh, kw, stride, padding)
    y = fused_matmul(patches, wm, bias, relu=True, out_dtype=jnp.bfloat16,
                     tm=tm, tn=tn)
    return y.reshape(n, oh, ow, cout)


def maxpool2d(x, k=3, s=2):
    # TODO(synk): max-pool kept in plain JAX (reduce_window); negligible FLOPs
    # compared with the Pallas conv matmuls.
    return jax.lax.reduce_window(x, jnp.array(-jnp.inf, x.dtype), jax.lax.max,
                                 (1, k, k, 1), (1, s, s, 1), "VALID")


def quantize_per_col_int8(w):
    """w:[K,N] f32 -> (int8 weights, per-output-column f32 dequant scale)."""
    amax = jnp.max(jnp.abs(w), axis=0)                    # [N]
    scale = jnp.where(amax > 0, amax / 127.0, 1.0)
    wq = jnp.clip(jnp.round(w / scale[None, :]), -127, 127).astype(jnp.int8)
    return wq, scale


def init_params(key, in_channel, out_class):
    def conv_p(k, cout, cin, kh, kw):
        ks = jax.random.split(k, 4)
        fan_in = cin * kh * kw
        w = jax.random.normal(ks[0], (cout, cin, kh, kw), jnp.float32) / jnp.sqrt(fan_in)
        b = 0.01 * jax.random.normal(ks[1], (cout,), jnp.float32)
        gamma = 1.0 + 0.1 * jax.random.normal(ks[2], (cout,), jnp.float32)
        beta = 0.1 * jax.random.normal(ks[3], (cout,), jnp.float32)
        mean = jnp.zeros((cout,), jnp.float32)      # BatchNorm running stats
        var = jnp.ones((cout,), jnp.float32)
        return (w, b, gamma, beta, mean, var)

    def fc_p(k, din, dout):
        k1, k2 = jax.random.split(k)
        w = jax.random.normal(k1, (din, dout), jnp.float32) / jnp.sqrt(din)
        b = 0.01 * jax.random.normal(k2, (dout,), jnp.float32)
        return (w, b)

    ks = jax.random.split(key, 6)
    return {
        "conv1": conv_p(ks[0], 64, in_channel, 11, 11),
        "conv2": conv_p(ks[1], 192, 64, 7, 7),
        "conv3": conv_p(ks[2], 384, 192, 5, 5),
        "conv4": conv_p(ks[3], 768, 384, 3, 3),
        "fc1": fc_p(ks[4], 3 * 3 * 768, 2048),
        "fc2": fc_p(ks[5], 2048, out_class),
    }


def prepare_params(params, eps=1e-5):
    """One-time inference prep (outside jit): fold BatchNorm (running stats)
    into the conv weights/bias, reshape conv weights to [kh*kw*Cin, Cout] bf16
    matmul form, and int8-quantize the fc1 weight (per-out-channel scales)."""
    prepped = {}
    for name in ("conv1", "conv2", "conv3", "conv4"):
        w, b, gamma, beta, mean, var = params[name]
        cout, cin, kh, kw = w.shape
        scale = gamma / jnp.sqrt(var + eps)
        bias = (b - mean) * scale + beta
        # [Cout,Cin,kh,kw] -> [kh,kw,Cin,Cout] to match the (kh,kw,C) patch
        # feature order; fold the BN scale into the columns.
        wm = w.transpose(2, 3, 1, 0).reshape(kh * kw * cin, cout) * scale[None, :]
        prepped[name] = (wm.astype(jnp.bfloat16), bias.astype(jnp.float32))
    w1, b1 = params["fc1"]
    w1q, s1 = quantize_per_col_int8(w1)
    prepped["fc1"] = (w1q, s1, b1.astype(jnp.float32))
    w2, b2 = params["fc2"]
    prepped["fc2"] = (w2.astype(jnp.bfloat16), b2.astype(jnp.float32))
    return prepped


# ----------------------------------------------------------------------------
# Forward pass (mirrors CNN2D.forward, inference mode).
# ----------------------------------------------------------------------------
def make_forward():
    if _TWO_TC:
        # Even tile counts so both TensorCores stay busy.
        conv2_tm, conv3_tn, conv4_tn, fc1_tn = 368, 128, 384, 512
    else:
        # Single TensorCore: full-dim blocks for tiny-M layers, bigger fc1 tile.
        conv2_tm, conv3_tn, conv4_tn, fc1_tn = None, None, None, 1024
    conv1_tm = 4096   # gi = 8 on the 384x384 / batch-2 input (was 31)

    @jax.jit
    def forward(x_nchw, prepped):
        x = jnp.transpose(x_nchw.astype(jnp.bfloat16), (0, 2, 3, 1))   # NCHW->NHWC
        w, b = prepped["conv1"]
        x = conv_layer(x, w, b, kh=11, kw=11, stride=3, padding=0, tm=conv1_tm)
        x = maxpool2d(x)
        w, b = prepped["conv2"]
        x = conv_layer(x, w, b, kh=7, kw=7, stride=3, padding=0, tm=conv2_tm)
        x = maxpool2d(x)
        w, b = prepped["conv3"]
        x = conv_layer(x, w, b, kh=5, kw=5, stride=3, padding=1, tn=conv3_tn)
        w, b = prepped["conv4"]
        x = conv_layer(x, w, b, kh=3, kw=3, stride=1, padding=1, tn=conv4_tn)
        # Dropout(p=0.1) -> identity at inference.
        n, h, wd, c = x.shape
        # einops 'b c h w -> b (c h w)': channel-major flatten, so back to NCHW order.
        x = jnp.transpose(x, (0, 3, 1, 2)).reshape(n, c * h * wd)
        w1q, s1, b1 = prepped["fc1"]
        x = fused_matmul(x, w1q, b1, relu=True, out_dtype=jnp.bfloat16,
                         tn=fc1_tn, w_scale=s1)
        w2, b2 = prepped["fc2"]
        x = fused_matmul(x, w2, b2, relu=False, out_dtype=jnp.float32)
        return x

    return forward


def _kernel_reference_check():
    """Small accuracy gate for the fused kernels (incl. the int8 fc1 path)."""
    k = jax.random.PRNGKey(1)
    ka, kb, kc = jax.random.split(k, 3)
    a = jax.random.normal(ka, (64, 256), jnp.float32)
    b = jax.random.normal(kb, (256, 384), jnp.float32)
    bias = jax.random.normal(kc, (384,), jnp.float32)
    a16 = a.astype(jnp.bfloat16).astype(jnp.float32)
    b16 = b.astype(jnp.bfloat16).astype(jnp.float32)
    ref = jnp.maximum(a16 @ b16 + bias, 0.0)
    got = fused_matmul(a, b, bias, relu=True, out_dtype=jnp.float32, tm=32, tn=128)
    assert jnp.allclose(got, ref, atol=0.25, rtol=0.05), "fused_matmul mismatch"
    wq, s = quantize_per_col_int8(b)
    ref_q = jnp.maximum(a16 @ (wq.astype(jnp.float32) * s[None, :]) + bias, 0.0)
    got_q = fused_matmul(a, wq, bias, relu=True, out_dtype=jnp.float32,
                         tn=128, w_scale=s)
    assert jnp.allclose(got_q, ref_q, atol=0.5, rtol=0.05), "int8 fused_matmul mismatch"


if __name__ == "__main__":
    key = jax.random.PRNGKey(0)
    kx, kp = jax.random.split(key)
    in_channel, out_class = 3, 10
    # The classifier hard-codes 3*3*768 features, so the conv stack must end at
    # 3x3 spatial; 384x384 input is the smallest "round" size that satisfies that.
    x = jax.random.normal(kx, (2, in_channel, 384, 384), jnp.float32)
    params = init_params(kp, in_channel, out_class)
    prepped = prepare_params(params)          # BN fold + int8 fc1, once, outside jit

    _kernel_reference_check()                 # accuracy gate for bf16 + int8 paths

    forward = make_forward()
    out = forward(x, prepped)
    out = jax.block_until_ready(out)
    assert out.shape == (2, out_class), out.shape
    assert jnp.all(jnp.isfinite(out))
    print("KERNEL_OK")
</pallas_src>

<mosaic_0001>
module attributes {stable_mosaic.version = 11 : i64} {
  func.func @_fused_matmul_kernel(%arg0: i32, %arg1: i32, %arg2: memref<32x256xbf16, #tpu.memory_space<vmem>>, %arg3: memref<256x128xbf16, #tpu.memory_space<vmem>>, %arg4: memref<1x128xf32, #tpu.memory_space<vmem>>, %arg5: memref<32x128xf32, #tpu.memory_space<vmem>>) attributes {dimension_semantics = [#tpu.dimension_semantics<parallel>, #tpu.dimension_semantics<parallel>], iteration_bounds = array<i64: 2, 3>, scalar_prefetch = 0 : i64, scratch_operands = 0 : i64, tpu.core_type = #tpu.core_type<tc>, window_params = [{transform_indices = @transform_0, window_bounds = array<i64: 32, 256>}, {transform_indices = @transform_1, window_bounds = array<i64: 256, 128>}, {transform_indices = @transform_2, window_bounds = array<i64: 1, 128>}, {transform_indices = @transform_3, window_bounds = array<i64: 32, 128>}]} {
    %c0 = arith.constant 0 : index
    %c0_0 = arith.constant 0 : index
    %0 = vector.load %arg2[%c0, %c0_0] : memref<32x256xbf16, #tpu.memory_space<vmem>>, vector<32x256xbf16>
    %c0_1 = arith.constant 0 : index
    %c0_2 = arith.constant 0 : index
    %1 = vector.load %arg3[%c0_1, %c0_2] : memref<256x128xbf16, #tpu.memory_space<vmem>>, vector<256x128xbf16>
    %cst = arith.constant dense<0.000000e+00> : vector<32x128xf32>
    %2 = tpu.matmul %0, %1, %cst {dimension_numbers = #tpu.dot_dimension_numbers<[1], [0], [0], [1], [0, 0, 1, 1], [], []>} : vector<32x256xbf16>, vector<256x128xbf16>, vector<32x128xf32> -> vector<32x128xf32>
    %c0_3 = arith.constant 0 : index
    %c0_4 = arith.constant 0 : index
    %3 = vector.load %arg4[%c0_3, %c0_4] : memref<1x128xf32, #tpu.memory_space<vmem>>, vector<1x128xf32>
    %4 = vector.broadcast %3 : vector<1x128xf32> to vector<32x128xf32>
    %5 = arith.addf %2, %4 : vector<32x128xf32>
    %cst_5 = arith.constant 0.000000e+00 : f32
    %6 = vector.broadcast %cst_5 : f32 to vector<32x128xf32>
    %7 = arith.maximumf %5, %6 : vector<32x128xf32>
    %c0_6 = arith.constant 0 : index
    %c0_7 = arith.constant 0 : index
    %8 = vector.load %arg5[%c0_6, %c0_7] : memref<32x128xf32, #tpu.memory_space<vmem>>, vector<32x128xf32>
    tpu.vector_store %arg5[%c0_6, %c0_7], %7 {strides = array<i32>} : memref<32x128xf32, #tpu.memory_space<vmem>>, vector<32x128xf32>,
    return
  }
  func.func @transform_0(%arg0: i32, %arg1: i32) -> (i32, i32) {
    %c0_i32 = arith.constant 0 : i32
    %c0_i32_0 = arith.constant 0 : i32
    return %arg0, %c0_i32 : i32, i32
  }
  func.func @transform_1(%arg0: i32, %arg1: i32) -> (i32, i32) {
    %c0_i32 = arith.constant 0 : i32
    %c0_i32_0 = arith.constant 0 : i32
    return %c0_i32, %arg1 : i32, i32
  }
  func.func @transform_2(%arg0: i32, %arg1: i32) -> (i32, i32) {
    %c0_i32 = arith.constant 0 : i32
    %c0_i32_0 = arith.constant 0 : i32
    return %c0_i32, %arg1 : i32, i32
  }
  func.func @transform_3(%arg0: i32, %arg1: i32) -> (i32, i32) {
    %c0_i32 = arith.constant 0 : i32
    return %arg0, %arg1 : i32, i32
  }
}

</mosaic_0001>

<llo_original>
// kernel: tpu_custom_call.1
$region0: #{tpu_custom_call.1}
  #allocation0 [shape = 'u32[]', space=smem, size = 0x4, offset = 0x4, fixed_abs, tag = 'smem constant byte address 0x4 - core index']
  #allocation1 [shape = 'u32[72,128]{1,0:T(1,128)}', space=vmem, size = 0x9000, scoped, tag = 'internal scratch']
  %s0 = inlined_call_operand.hbm [shape: bf16[64,256], index: 0, kind: input, shape index: {}]
  %s1 = inlined_call_operand.hbm [shape: bf16[256,384], index: 1, kind: input, shape index: {}]
  %s2 = inlined_call_operand.hbm [shape: f32[1,384], index: 2, kind: input, shape index: {}]
  %s3 = inlined_call_operand.hbm [shape: f32[64,384], index: 3, kind: output, shape index: {}]
  %s4 = sld [smem:[#allocation0]]
  $region57: #{tpu_custom_call.1} parent=0
    _
  %s6 = ssub.s32 1, %s4
  %s7 = scalar_select 0, %s6, %s4
  $region1: #{tpu_custom_call.1} parent=0
    #allocation2 [shape = 'u8[32768]{0}', space=vmem, size = 0x8000, scoped, tag = 'input window, operand 0']
    #allocation3 [shape = 's32[2]{0}', space=sflag, size = 0x8, scoped, tag = 'scoped memory for tpu_custom_call.1']
    #allocation4 [shape = 's32[2]{0}', space=sflag, size = 0x8, scoped, tag = 'scoped memory for tpu_custom_call.1']
    #allocation5 [shape = 'u8[131072]{0}', space=vmem, size = 0x20000, scoped, tag = 'input window, operand 1']
    #allocation6 [shape = 's32[2]{0}', space=sflag, size = 0x8, scoped, tag = 'scoped memory for tpu_custom_call.1']
    #allocation7 [shape = 'u8[1024]{0}', space=vmem, size = 0x400, scoped, tag = 'input window, operand 2']
    #allocation8 [shape = 'u8[32768]{0}', space=vmem, size = 0x8000, scoped, tag = 'output window, operand 0']
    %8 = vsyncpa [#allocation3], 0
    %s9 = scalar_lea.sflag [#allocation3], 1
    %10 = vsyncpa %s9, 0
    %11 = vsyncpa [#allocation6], 0
    %s12 = scalar_lea.sflag [#allocation6], 1
    %13 = vsyncpa %s12, 0
    %14 = vsyncpa [#allocation4], 0
    %s15 = scalar_lea.sflag [#allocation4], 1
    %16 = vsyncpa %s15, 0
    loop: start=0, step=1, limit=8
    $region2: #{tpu_custom_call.1} parent=1 // loop_pre_header
      _
    $region3: #{tpu_custom_call.1} parent=1 // loop_header
      %s18 = sphi 0, %s22
      %p19 = scmp.ge.s32.totalorder %s18, 8
      %s25 = sphi 0, %s37
      %s26 = sphi 0, %s33
      %s27 = sphi 0, %s25
      %s28 = sphi 0, %s26
      %s29 = sphi 0, %s27
      %s30 = sphi 0, %s28
      %s40 = sphi 0, %s42
      %s43 = sphi 0, %s40
      %s44 = sphi 0, %s43
      %s60 = sphi 0, %s44
      %s66 = sphi 0, %s68
      %s69 = sphi 0, %s66
      %s70 = sphi 0, %s69
      %s86 = sphi 0, %s70
      %s92 = sphi 0, %s94
      %s95 = sphi 0, %s92
      %s96 = sphi 0, %s95
      %s112 = sphi 0, %s96
      %s120 = sphi 0, %s122
      %s123 = sphi 0, %s120
      %s124 = sphi 0, %s123
      %s140 = sphi 0, %s124
    $region4: #{tpu_custom_call.1} parent=1 // loop_header_branch
      %21 = sbr.rel (%p19) target = $region8
    $region5: #{tpu_custom_call.1} parent=1 // loop_body
      %s23 = ssub.s32 %s18, 1
      %s24 = ssub.s32 %s18, 2
      %s31 = sadd.s32 1, %s26
      %p32 = scmp.ge.s32.totalorder %s31, 3
      %s33 = scalar_select %p32, 0, %s31
      %s34 = sadd.s32 1, %s25
      %s35 = scalar_select %p32, %s34, %s25
      %p36 = scmp.ge.s32.totalorder %s35, 2
      %s37 = scalar_select %p36, 0, %s35
      %s38 = ssub.s32 %s25, %s37
      %p39 = scmp.eq.s32.totalorder %s38, 0
      %s41 = sadd.s32 %s40, 1
      %s42 = scalar_select %p39, %s40, %s41
      %p45 = pneg %p39
      %p46 = scmp.eq.s32.totalorder %s18, 5
      %p47 = por %p45, %p46
      %p48 = scmp.ne.s32.totalorder %s40, %s43
      %p49 = scmp.eq.s32.totalorder %s18, 0
      %p50 = por %p48, %p49
      %p51 = scmp.ne.s32.totalorder %s40, %s43
      %p52 = scmp.eq.s32.totalorder %s23, 5
      %p53 = por %p51, %p52
      %p54 = scmp.ne.s32.totalorder %s43, %s44
      %p55 = scmp.eq.s32.totalorder %s23, 0
      %p56 = por %p54, %p55
      %p57 = scmp.ne.s32.totalorder %s43, %s44
      %p58 = scmp.eq.s32.totalorder %s24, 5
      %p59 = por %p57, %p58
      %p61 = scmp.ne.s32.totalorder %s44, %s60
      %p62 = scmp.eq.s32.totalorder %s24, 0
      %p63 = por %p61, %p62
      %s64 = ssub.s32 %s26, %s33
      %p65 = scmp.eq.s32.totalorder %s64, 0
      %s67 = sadd.s32 %s66, 1
      %s68 = scalar_select %p65, %s66, %s67
      %p71 = pneg %p65
      %p72 = scmp.eq.s32.totalorder %s18, 5
      %p73 = por %p71, %p72
      %p74 = scmp.ne.s32.totalorder %s66, %s69
      %p75 = scmp.eq.s32.totalorder %s18, 0
      %p76 = por %p74, %p75
      %p77 = scmp.ne.s32.totalorder %s66, %s69
      %p78 = scmp.eq.s32.totalorder %s23, 5
      %p79 = por %p77, %p78
      %p80 = scmp.ne.s32.totalorder %s69, %s70
      %p81 = scmp.eq.s32.totalorder %s23, 0
      %p82 = por %p80, %p81
      %p83 = scmp.ne.s32.totalorder %s69, %s70
      %p84 = scmp.eq.s32.totalorder %s24, 5
      %p85 = por %p83, %p84
      %p87 = scmp.ne.s32.totalorder %s70, %s86
      %p88 = scmp.eq.s32.totalorder %s24, 0
      %p89 = por %p87, %p88
      %s90 = ssub.s32 %s26, %s33
      %p91 = scmp.eq.s32.totalorder %s90, 0
      %s93 = sadd.s32 %s92, 1
      %s94 = scalar_select %p91, %s92, %s93
      %p97 = pneg %p91
      %p98 = scmp.eq.s32.totalorder %s18, 5
      %p99 = por %p97, %p98
      %p100 = scmp.ne.s32.totalorder %s92, %s95
      %p101 = scmp.eq.s32.totalorder %s18, 0
      %p102 = por %p100, %p101
      %p103 = scmp.ne.s32.totalorder %s92, %s95
      %p104 = scmp.eq.s32.totalorder %s23, 5
      %p105 = por %p103, %p104
      %p106 = scmp.ne.s32.totalorder %s95, %s96
      %p107 = scmp.eq.s32.totalorder %s23, 0
      %p108 = por %p106, %p107
      %p109 = scmp.ne.s32.totalorder %s95, %s96
      %p110 = scmp.eq.s32.totalorder %s24, 5
      %p111 = por %p109, %p110
      %p113 = scmp.ne.s32.totalorder %s96, %s112
      %p114 = scmp.eq.s32.totalorder %s24, 0
      %p115 = por %p113, %p114
      %s116 = ssub.s32 %s25, %s37
      %s117 = ssub.s32 %s26, %s33
      %s118 = sor.u32 %s116, %s117
      %p119 = scmp.eq.s32.totalorder %s118, 0
      %s121 = sadd.s32 %s120, 1
      %s122 = scalar_select %p119, %s120, %s121
      %p125 = pneg %p119
      %p126 = scmp.eq.s32.totalorder %s18, 5
      %p127 = por %p125, %p126
      %p128 = scmp.ne.s32.totalorder %s120, %s123
      %p129 = scmp.eq.s32.totalorder %s18, 0
      %p130 = por %p128, %p129
      %p131 = scmp.ne.s32.totalorder %s120, %s123
      %p132 = scmp.eq.s32.totalorder %s23, 5
      %p133 = por %p131, %p132
      %p134 = scmp.ne.s32.totalorder %s123, %s124
      %p135 = scmp.eq.s32.totalorder %s23, 0
      %p136 = por %p134, %p135
      %p137 = scmp.ne.s32.totalorder %s123, %s124
      %p138 = scmp.eq.s32.totalorder %s24, 5
      %p139 = por %p137, %p138
      %p141 = scmp.ne.s32.totalorder %s124, %s140
      %p142 = scmp.eq.s32.totalorder %s24, 0
      %p143 = por %p141, %p142
      %p144 = scmp.le.s32.totalorder 1, %s18
      %p145 = scmp.lt.s32.totalorder %s18, 7
      %p146 = pnand %p144, %p145
      %p147 = pneg %p146
      // Predicated region
      $region9: #{tpu_custom_call.1} parent=5 // pred_check
        _
      $region10: #{tpu_custom_call.1} parent=5 // pred_check_branch
        %149 = sbr.rel (%p146) target = $region12
      $region11: #{tpu_custom_call.1} parent=5 // pred_region
        %s150 = ssub.s32 %s18, 1
      $region12: #{tpu_custom_call.1} parent=5 // pred_fallthru
        _
      %p151 = scmp.lt.s32.totalorder %s18, 6
      // Predicated region
      $region13: #{tpu_custom_call.1} parent=5 // pred_check
        %p152 = pneg %p151
      $region14: #{tpu_custom_call.1} parent=5 // pred_check_branch
        %154 = sbr.rel (%p152) target = $region16
      $region15: #{tpu_custom_call.1} parent=5 // pred_region
        // Predicated region
        $region17: #{tpu_custom_call.1} parent=15 // pred_check
          %p155 = pneg %p50
        $region18: #{tpu_custom_call.1} parent=15 // pred_check_branch
          %157 = sbr.rel (%p155) target = $region20
        $region19: #{tpu_custom_call.1} parent=15 // pred_region
          %s158 = sand.u32 %s40, 1
          %s159 = scalar_lea.sflag [#allocation3], %s158
          %s160 = sand.u32 %s40, 1
          %s161 = smul.addr %s160, 32
          %s162 = scalar_lea.vmem [#allocation2], %s161
          %s163 = smul.u32 4, %s25
          %165 = vsyncadd %s159, 0
          %s166 = smul.addr %s163, 2
          %s167 = smul.addr %s166, 4
          %s168 = scalar_lea.hbm %s0, %s167
          %s169 = sshll.u32 %s168, 4
          %s170 = int_to_ptr.hbm [resolvable:$true] %s169
          %s171 = sshll.u32 %s162, 4
          %s172 = int_to_ptr.vmem [resolvable:$true] %s171
          %177 = dma.hbm_to_vmem [thread:$0]  %s170, 512, %s172, %s159, 128, 128, 8
        $region20: #{tpu_custom_call.1} parent=15 // pred_fallthru
          _
        // Predicated region
        $region21: #{tpu_custom_call.1} parent=15 // pred_check
          %p178 = pneg %p76
        $region22: #{tpu_custom_call.1} parent=15 // pred_check_branch
          %180 = sbr.rel (%p178) target = $region24
        $region23: #{tpu_custom_call.1} parent=15 // pred_region
          %s181 = sand.u32 %s18, 1
          %s182 = scalar_lea.sflag [#allocation6], %s181
          %s183 = sand.u32 %s66, 1
          %s184 = smul.addr %s183, 128
          %s185 = scalar_lea.vmem [#allocation5], %s184
          %187 = vsyncadd %s182, 0
          %s188 = smul.addr %s26, 4
          %s189 = scalar_lea.hbm %s1, %s188
          %s190 = sshll.u32 %s189, 4
          %s191 = int_to_ptr.hbm [resolvable:$true] %s190
          %s192 = sshll.u32 %s185, 4
          %s193 = int_to_ptr.vmem [resolvable:$true] %s192
          %198 = dma.hbm_to_vmem [thread:$0]  %s191, 2048, %s193, %s182, 192, 64, 4
        $region24: #{tpu_custom_call.1} parent=15 // pred_fallthru
          _
        // Predicated region
        $region25: #{tpu_custom_call.1} parent=15 // pred_check
          %p199 = pneg %p102
        $region26: #{tpu_custom_call.1} parent=15 // pred_check_branch
          %201 = sbr.rel (%p199) target = $region28
        $region27: #{tpu_custom_call.1} parent=15 // pred_region
          %s202 = sand.u32 %s18, 1
          %s203 = scalar_lea.sflag [#allocation6], %s202
          %s204 = sand.u32 %s92, 1
          %s205 = scalar_lea.vmem [#allocation7], %s204
          %207 = vsyncadd %s203, 0
          %s208 = scalar_lea.hbm %s2, %s26
          %s210 = sshll.u32 %s208, 4
          %s211 = int_to_ptr.hbm [resolvable:$true] %s210
          %s212 = sshll.u32 %s205, 4
          %s213 = int_to_ptr.vmem [resolvable:$true] %s212
          %215 = dma.hbm_to_vmem [thread:$0]  %s211, 16, %s213, %s203
        $region28: #{tpu_custom_call.1} parent=15 // pred_fallthru
          _
      $region16: #{tpu_custom_call.1} parent=5 // pred_fallthru
        _
      %p216 = scmp.le.s32.totalorder 1, %s18
      %p217 = scmp.lt.s32.totalorder %s18, 7
      %p218 = pnand %p216, %p217
      %p219 = pneg %p218
      // Predicated region
      $region29: #{tpu_custom_call.1} parent=5 // pred_check
        _
      $region30: #{tpu_custom_call.1} parent=5 // pred_check_branch
        %221 = sbr.rel (%p218) target = $region32
      $region31: #{tpu_custom_call.1} parent=5 // pred_region
        %s222 = ssub.s32 %s18, 1
        %s223 = sand.u32 %s43, 1
        %s224 = scalar_lea.sflag [#allocation3], %s223
        %s225 = sand.u32 %s43, 1
        %s226 = smul.addr %s225, 32
        %s227 = scalar_lea.vmem [#allocation2], %s226
        // Predicated region
        $region33: #{tpu_custom_call.1} parent=31 // pred_check
          %p228 = pneg %p56
        $region34: #{tpu_custom_call.1} parent=31 // pred_check_branch
          %230 = sbr.rel (%p228) target = $region36
        $region35: #{tpu_custom_call.1} parent=31 // pred_region
          %232 = dma.done %s224, 512
        $region36: #{tpu_custom_call.1} parent=31 // pred_fallthru
          _
        %s233 = sand.u32 %s23, 1
        %s234 = scalar_lea.sflag [#allocation6], %s233
        %s235 = sand.u32 %s69, 1
        %s236 = smul.addr %s235, 128
        %s237 = scalar_lea.vmem [#allocation5], %s236
        // Predicated region
        $region37: #{tpu_custom_call.1} parent=31 // pred_check
          %p238 = pneg %p82
        $region38: #{tpu_custom_call.1} parent=31 // pred_check_branch
          %240 = sbr.rel (%p238) target = $region40
        $region39: #{tpu_custom_call.1} parent=31 // pred_region
          %242 = dma.done %s234, 2048
        $region40: #{tpu_custom_call.1} parent=31 // pred_fallthru
          _
        %s243 = sand.u32 %s23, 1
        %s244 = scalar_lea.sflag [#allocation6], %s243
        %s245 = sand.u32 %s95, 1
        %s246 = scalar_lea.vmem [#allocation7], %s245
        // Predicated region
        $region41: #{tpu_custom_call.1} parent=31 // pred_check
          %p247 = pneg %p108
        $region42: #{tpu_custom_call.1} parent=31 // pred_check_branch
          %249 = sbr.rel (%p247) target = $region44
        $region43: #{tpu_custom_call.1} parent=31 // pred_region
          %251 = dma.done %s244, 16
        $region44: #{tpu_custom_call.1} parent=31 // pred_fallthru
          _
        %s252 = sand.u32 %s43, 1
        %s253 = scalar_lea.sflag [#allocation3], %s252
        %s254 = sand.u32 %s43, 1
        %s255 = smul.addr %s254, 32
        %s256 = scalar_lea.vmem [#allocation2], %s255
        %p257 = pneg %p56
        %p258 = pneg %p53
        %s259 = sand.u32 %s23, 1
        %s260 = scalar_lea.sflag [#allocation6], %s259
        %s261 = sand.u32 %s69, 1
        %s262 = smul.addr %s261, 128
        %s263 = scalar_lea.vmem [#allocation5], %s262
        %p264 = pneg %p82
        %p265 = pneg %p79
        %s266 = sand.u32 %s23, 1
        %s267 = scalar_lea.sflag [#allocation6], %s266
        %s268 = sand.u32 %s95, 1
        %s269 = scalar_lea.vmem [#allocation7], %s268
        %p270 = pneg %p108
        %p271 = pneg %p105
        %p272 = pneg %p136
        %p273 = pneg %p133
        %s274 = sand.u32 %s123, 1
        %s275 = scalar_lea.sflag [#allocation4], %s274
        %s276 = sand.u32 %s123, 1
        %s277 = smul.addr %s276, 32
        %s278 = scalar_lea.vmem [#allocation8], %s277
        %s279 = smul.u32 4, %s27
        %s280 = smul.u32 4, %s27
        %v281 = vld [vmem:[%s227] sm:$0xff]
        %v282 = vld [vmem:[%s227 + $0x8] sm:$0xff]
        %v283 = vld [vmem:[%s227 + $0x10] sm:$0xff]
        %v284 = vld [vmem:[%s227 + $0x18] sm:$0xff]
        %v285 = vld [vmem:[%s237] sm:$0xf]
        %v286 = vld [vmem:[%s237 + $0x4] sm:$0xf]
        %v287 = vld [vmem:[%s237 + $0x8] sm:$0xf]
        %v288 = vld [vmem:[%s237 + $0xc] sm:$0xf]
        %v289 = vld [vmem:[%s237 + $0x10] sm:$0xf]
        %v290 = vld [vmem:[%s237 + $0x14] sm:$0xf]
        %v291 = vld [vmem:[%s237 + $0x18] sm:$0xf]
        %v292 = vld [vmem:[%s237 + $0x1c] sm:$0xf]
        %v293 = vld [vmem:[%s237 + $0x20] sm:$0xf]
        %v294 = vld [vmem:[%s237 + $0x24] sm:$0xf]
        %v295 = vld [vmem:[%s237 + $0x28] sm:$0xf]
        %v296 = vld [vmem:[%s237 + $0x2c] sm:$0xf]
        %v297 = vld [vmem:[%s237 + $0x30] sm:$0xf]
        %v298 = vld [vmem:[%s237 + $0x34] sm:$0xf]
        %v299 = vld [vmem:[%s237 + $0x38] sm:$0xf]
        %v300 = vld [vmem:[%s237 + $0x3c] sm:$0xf]
        %v301 = vld [vmem:[%s237 + $0x40] sm:$0xf]
        %v302 = vld [vmem:[%s237 + $0x44] sm:$0xf]
        %v303 = vld [vmem:[%s237 + $0x48] sm:$0xf]
        %v304 = vld [vmem:[%s237 + $0x4c] sm:$0xf]
        %v305 = vld [vmem:[%s237 + $0x50] sm:$0xf]
        %v306 = vld [vmem:[%s237 + $0x54] sm:$0xf]
        %v307 = vld [vmem:[%s237 + $0x58] sm:$0xf]
        %v308 = vld [vmem:[%s237 + $0x5c] sm:$0xf]
        %v309 = vld [vmem:[%s237 + $0x60] sm:$0xf]
        %v310 = vld [vmem:[%s237 + $0x64] sm:$0xf]
        %v311 = vld [vmem:[%s237 + $0x68] sm:$0xf]
        %v312 = vld [vmem:[%s237 + $0x6c] sm:$0xf]
        %v313 = vld [vmem:[%s237 + $0x70] sm:$0xf]
        %v314 = vld [vmem:[%s237 + $0x74] sm:$0xf]
        %v315 = vld [vmem:[%s237 + $0x78] sm:$0xf]
        %v316 = vld [vmem:[%s237 + $0x7c] sm:$0xf]
        %v317 = vld [vmem:[%s246] sm:$0x1]
        %v319 = vperm.slane %v317, 0
        %v325 = vunpack.c.l.b16 %v281
        %v326 = vunpack.c.h.b16 %v281
        %v327 = vunpack.c.l.b16 %v282
        %v328 = vunpack.c.h.b16 %v282
        %v329 = vunpack.c.l.b16 %v283
        %v330 = vunpack.c.h.b16 %v283
        %v331 = vunpack.c.l.b16 %v284
        %v332 = vunpack.c.h.b16 %v284
        %v333 = vpack.c.b16 %v327, %v325
        %v334 = vpack.c.b16 %v328, %v326
        %v335 = vpack.c.b16 %v331, %v329
        %v336 = vpack.c.b16 %v332, %v330
        %v373 = vunpack.c.l.b16 %v285
        %v374 = vunpack.c.l.b16 %v286
        %v375 = vunpack.c.l.b16 %v287
        %v376 = vunpack.c.l.b16 %v288
        %v377 = vunpack.c.l.b16 %v289
        %v378 = vunpack.c.l.b16 %v290
        %v379 = vunpack.c.l.b16 %v291
        %v380 = vunpack.c.l.b16 %v292
        %v381 = vunpack.c.l.b16 %v293
        %v382 = vunpack.c.l.b16 %v294
        %v383 = vunpack.c.l.b16 %v295
        %v384 = vunpack.c.l.b16 %v296
        %v385 = vunpack.c.l.b16 %v297
        %v386 = vunpack.c.l.b16 %v298
        %v387 = vunpack.c.l.b16 %v299
        %v388 = vunpack.c.l.b16 %v300
        %v389 = vunpack.c.l.b16 %v301
        %v390 = vunpack.c.l.b16 %v302
        %v391 = vunpack.c.l.b16 %v303
        %v392 = vunpack.c.l.b16 %v304
        %v393 = vunpack.c.l.b16 %v305
        %v394 = vunpack.c.l.b16 %v306
        %v395 = vunpack.c.l.b16 %v307
        %v396 = vunpack.c.l.b16 %v308
        %v397 = vunpack.c.l.b16 %v309
        %v398 = vunpack.c.l.b16 %v310
        %v399 = vunpack.c.l.b16 %v311
        %v400 = vunpack.c.l.b16 %v312
        %v401 = vunpack.c.l.b16 %v313
        %v402 = vunpack.c.l.b16 %v314
        %v403 = vunpack.c.l.b16 %v315
        %v404 = vunpack.c.l.b16 %v316
        %v405 = vpack.c.b16 %v374, %v373
        %v406 = vpack.c.b16 %v376, %v375
        %v407 = vpack.c.b16 %v378, %v377
        %v408 = vpack.c.b16 %v380, %v379
        %v409 = vpack.c.b16 %v382, %v381
        %v410 = vpack.c.b16 %v384, %v383
        %v411 = vpack.c.b16 %v386, %v385
        %v412 = vpack.c.b16 %v388, %v387
        %v413 = vpack.c.b16 %v390, %v389
        %v414 = vpack.c.b16 %v392, %v391
        %v415 = vpack.c.b16 %v394, %v393
        %v416 = vpack.c.b16 %v396, %v395
        %v417 = vpack.c.b16 %v398, %v397
        %v418 = vpack.c.b16 %v400, %v399
        %v419 = vpack.c.b16 %v402, %v401
        %v420 = vpack.c.b16 %v404, %v403
        %437 = vmatpush.bf16.msra.mxu0 %v412
        %438 = vmatpush.bf16.msra.mxu0 %v411
        %439 = vmatpush.bf16.msra.mxu0 %v410
        %440 = vmatpush.bf16.msra.mxu0 %v409
        %441 = vmatpush.bf16.msra.mxu0 %v408
        %442 = vmatpush.bf16.msra.mxu0 %v407
        %443 = vmatpush.bf16.msra.mxu0 %v406
        %444 = vmatpush.bf16.msra.mxu0 %v405
        %445 = vmatmul.bf16.gmra.mxu0 %v333
        %v446 = vpop.f32.mrf.mxu0
        %v447 = vadd.f32 %v319, %v446
        %v448 = vpop.f32.mrf.mxu0
        %v449 = vadd.f32 %v319, %v448
        %450 = vmatmul.bf16.gmra.mxu0 %v335
        %v451 = vpop.f32.mrf.mxu0
        %v452 = vadd.f32 %v319, %v451
        %v453 = vpop.f32.mrf.mxu0
        %v454 = vadd.f32 %v319, %v453
        %455 = vdwg.mxu0
        %456 = vmatpush.bf16.msra.mxu0 %v420
        %457 = vmatpush.bf16.msra.mxu0 %v419
        %458 = vmatpush.bf16.msra.mxu0 %v418
        %459 = vmatpush.bf16.msra.mxu0 %v417
        %460 = vmatpush.bf16.msra.mxu0 %v416
        %461 = vmatpush.bf16.msra.mxu0 %v415
        %462 = vmatpush.bf16.msra.mxu0 %v414
        %463 = vmatpush.bf16.msra.mxu0 %v413
        %464 = vmatmul.bf16.gmra.mxu0 %v334
        %v465 = vpop.f32.mrf.mxu0
        %v466 = vadd.f32 %v447, %v465
        %v467 = vpop.f32.mrf.mxu0
        %v468 = vadd.f32 %v449, %v467
        %469 = vmatmul.bf16.gmra.mxu0 %v336
        %v470 = vpop.f32.mrf.mxu0
        %v471 = vadd.f32 %v452, %v470
        %v472 = vpop.f32.mrf.mxu0
        %v473 = vadd.f32 %v454, %v472
        %474 = vdwg.mxu0
        %v475 = vmax.f32 %v466, 0.0
        %v476 = vmax.f32 %v468, 0.0
        %v477 = vmax.f32 %v471, 0.0
        %v478 = vmax.f32 %v473, 0.0
        %479 = vst [vmem:[%s278] sm:$0xff] %v475
        %480 = vst [vmem:[%s278 + $0x8] sm:$0xff] %v476
        %481 = vst [vmem:[%s278 + $0x10] sm:$0xff] %v477
        %482 = vst [vmem:[%s278 + $0x18] sm:$0xff] %v478
        %s483 = sand.u32 %s123, 1
        %s484 = scalar_lea.sflag [#allocation4], %s483
        %s485 = sand.u32 %s123, 1
        %s486 = smul.addr %s485, 32
        %s487 = scalar_lea.vmem [#allocation8], %s486
        // Predicated region
        $region45: #{tpu_custom_call.1} parent=31 // pred_check
          %p488 = pneg %p133
        $region46: #{tpu_custom_call.1} parent=31 // pred_check_branch
          %490 = sbr.rel (%p488) target = $region48
        $region47: #{tpu_custom_call.1} parent=31 // pred_region
          %s491 = smul.u32 4, %s27
          %493 = vsyncadd %s484, 0
          %s494 = smul.addr %s491, 3
          %s495 = sadd.s32 %s28, %s494
          %s496 = smul.addr %s495, 8
          %s497 = scalar_lea.hbm %s3, %s496
          %s498 = sshll.u32 %s487, 4
          %s499 = int_to_ptr.vmem [resolvable:$true] %s498
          %s500 = sshll.u32 %s497, 4
          %s501 = int_to_ptr.hbm [resolvable:$true] %s500
          %506 = dma.vmem_to_hbm [thread:$0]  %s499, 512, %s501, %s484, 128, 384, 8
        $region48: #{tpu_custom_call.1} parent=31 // pred_fallthru
          _
      $region32: #{tpu_custom_call.1} parent=5 // pred_fallthru
        _
      %p507 = scmp.le.s32.totalorder 2, %s18
      // Predicated region
      $region49: #{tpu_custom_call.1} parent=5 // pred_check
        %p508 = pneg %p507
      $region50: #{tpu_custom_call.1} parent=5 // pred_check_branch
        %510 = sbr.rel (%p508) target = $region52
      $region51: #{tpu_custom_call.1} parent=5 // pred_region
        %s511 = ssub.s32 %s18, 2
        // Predicated region
        $region53: #{tpu_custom_call.1} parent=51 // pred_check
          %p512 = pneg %p139
        $region54: #{tpu_custom_call.1} parent=51 // pred_check_branch
          %514 = sbr.rel (%p512) target = $region56
        $region55: #{tpu_custom_call.1} parent=51 // pred_region
          %s515 = sand.u32 %s124, 1
          %s516 = scalar_lea.sflag [#allocation4], %s515
          %s517 = sand.u32 %s124, 1
          %s518 = smul.addr %s517, 32
          %s519 = scalar_lea.vmem [#allocation8], %s518
          %521 = dma.done %s516, 512
        $region56: #{tpu_custom_call.1} parent=51 // pred_fallthru
          _
      $region52: #{tpu_custom_call.1} parent=5 // pred_fallthru
        _
    $region6: #{tpu_custom_call.1} parent=1 // loop_footer
      %s22 = sadd.s32 1, %s18
    $region7: #{tpu_custom_call.1} parent=1 // loop_footer_branch
      %17 = sbr.rel target = $region3
    $region8: #{tpu_custom_call.1} parent=1 // loop_exit
      _
    %522 = vsyncpa [#allocation3], 1
    %s523 = scalar_lea.sflag [#allocation3], 1
    %524 = vsyncpa %s523, 1
    %525 = vsyncpa [#allocation6], 1
    %s526 = scalar_lea.sflag [#allocation6], 1
    %527 = vsyncpa %s526, 1
    %528 = vsyncpa [#allocation4], 1
    %s529 = scalar_lea.sflag [#allocation4], 1
    %530 = vsyncpa %s529, 1

</llo_original>
